<compile_context>
chip_gen: v7x
topology: tpu7x:2x2x1
jax: 0.10.0
libtpu: 0.0.40
codegen_flags: <defaults>
</compile_context>

<pallas_src>
import functools

import jax
import jax.numpy as jnp
from jax import lax
from jax.experimental import pallas as pl
from jax.experimental.pallas import tpu as pltpu


# ------------------------------ helpers --------------------------------------

def _round_up(a, m):
    return -(-a // m) * m


def _choose_row_tile(R, D, itemsize, *, max_tr=1024, n_streams=3,
                     extra_bytes=0, vmem_budget=24 * 1024 * 1024):
    """Largest row tile that (a) is sublane-pack aligned, (b) keeps the
    double-buffered working set under a conservative VMEM budget (sized for
    v7x's 32 MiB scoped default), (c) doesn't waste >~25% of rows on tail
    padding."""
    itemsize = max(int(itemsize), 1)
    sub = max(8, 32 // itemsize)          # 8 for f32, 16 for bf16, 32 for int8

    def fsub(v):
        return max(sub, (v // sub) * sub)

    tr = fsub(max_tr)
    while tr > sub and n_streams * 2 * tr * D * itemsize + extra_bytes > vmem_budget:
        tr = fsub(tr // 2)
    tr = min(tr, _round_up(max(R, 1), sub))
    while tr > sub and (_round_up(R, tr) - R) * 4 > R:
        tr = fsub(tr // 2)
    return tr


def _pad_rows(a2, Rp):
    R = a2.shape[0]
    if Rp == R:
        return a2
    return jnp.pad(a2, ((0, Rp - R), (0, 0)))


# ------------------------------ kernels --------------------------------------

def _layernorm_kernel(x_ref, gb_ref, o_ref, *, eps):
    x = x_ref[...].astype(jnp.float32)                       # (TR, D)
    gamma = gb_ref[0:1, :].astype(jnp.float32)                # (1, D)
    beta = gb_ref[1:2, :].astype(jnp.float32)                 # (1, D)
    mean = jnp.mean(x, axis=-1, keepdims=True)
    xc = x - mean
    var = jnp.mean(xc * xc, axis=-1, keepdims=True)
    y = xc * lax.rsqrt(var + eps) * gamma + beta
    o_ref[...] = y.astype(o_ref.dtype)


def _residual_add_kernel(x_ref, z_ref, o_ref):
    o_ref[...] = (x_ref[...].astype(jnp.float32)
                  + z_ref[...].astype(jnp.float32)).astype(o_ref.dtype)


def _residual_add_dropout_kernel(x_ref, z_ref, m_ref, o_ref):
    # m_ref already carries keep-mask * 1/(1-p).
    x = x_ref[...].astype(jnp.float32)
    z = z_ref[...].astype(jnp.float32) * m_ref[...]
    o_ref[...] = (x + z).astype(o_ref.dtype)


def _fused_ln_linear_residual_kernel(x_ref, gb_ref, w_ref, b_ref, o_ref, *, eps):
    x = x_ref[...].astype(jnp.float32)
    gamma = gb_ref[0:1, :].astype(jnp.float32)
    beta = gb_ref[1:2, :].astype(jnp.float32)
    mean = jnp.mean(x, axis=-1, keepdims=True)
    xc = x - mean
    var = jnp.mean(xc * xc, axis=-1, keepdims=True)
    y = xc * lax.rsqrt(var + eps) * gamma + beta
    z = jnp.dot(y, w_ref[...].astype(jnp.float32),
                preferred_element_type=jnp.float32)
    z = z + b_ref[...].astype(jnp.float32)
    o_ref[...] = (x + z).astype(o_ref.dtype)


def _fused_ln_linear_residual_dropout_kernel(x_ref, gb_ref, w_ref, b_ref,
                                             m_ref, o_ref, *, eps):
    x = x_ref[...].astype(jnp.float32)
    gamma = gb_ref[0:1, :].astype(jnp.float32)
    beta = gb_ref[1:2, :].astype(jnp.float32)
    mean = jnp.mean(x, axis=-1, keepdims=True)
    xc = x - mean
    var = jnp.mean(xc * xc, axis=-1, keepdims=True)
    y = xc * lax.rsqrt(var + eps) * gamma + beta
    z = jnp.dot(y, w_ref[...].astype(jnp.float32),
                preferred_element_type=jnp.float32)
    z = (z + b_ref[...].astype(jnp.float32)) * m_ref[...]
    o_ref[...] = (x + z).astype(o_ref.dtype)


# ------------------------------ wrappers --------------------------------------

def layernorm_pallas(x2, gamma, beta, *, eps=1e-5, max_tr=1024):
    R, D = x2.shape
    itemsize = jnp.dtype(x2.dtype).itemsize
    tr = _choose_row_tile(R, D, itemsize, max_tr=max_tr, n_streams=3)
    Rp = _round_up(R, tr)
    xp = _pad_rows(x2, Rp)
    gb = jnp.stack([gamma, beta]).astype(jnp.float32)         # (2, D)

    row_spec = pl.BlockSpec((tr, D), lambda i: (i, 0))
    out = pl.pallas_call(
        functools.partial(_layernorm_kernel, eps=eps),
        out_shape=jax.ShapeDtypeStruct((Rp, D), x2.dtype),
        grid=(Rp // tr,),
        in_specs=[row_spec, pl.BlockSpec((2, D), lambda i: (0, 0))],
        out_specs=row_spec,
        compiler_params=pltpu.CompilerParams(
            dimension_semantics=("parallel",)),
        cost_estimate=pl.CostEstimate(
            flops=8 * Rp * D, transcendentals=Rp,
            bytes_accessed=2 * Rp * D * itemsize),
    )(xp, gb)
    return out[:R] if Rp != R else out


def residual_add_pallas(x2, z2, *, mask2=None, max_tr=1024):
    R, D = x2.shape
    itemsize = jnp.dtype(x2.dtype).itemsize
    n_streams = 3 if mask2 is None else 4
    tr = _choose_row_tile(R, D, itemsize, max_tr=max_tr, n_streams=n_streams)
    Rp = _round_up(R, tr)

    row_spec = pl.BlockSpec((tr, D), lambda i: (i, 0))
    if mask2 is None:
        kernel = _residual_add_kernel
        in_specs = [row_spec, row_spec]
        args = (_pad_rows(x2, Rp), _pad_rows(z2, Rp))
    else:
        kernel = _residual_add_dropout_kernel
        in_specs = [row_spec, row_spec, row_spec]
        args = (_pad_rows(x2, Rp), _pad_rows(z2, Rp),
                _pad_rows(mask2.astype(jnp.float32), Rp))

    out = pl.pallas_call(
        kernel,
        out_shape=jax.ShapeDtypeStruct((Rp, D), x2.dtype),
        grid=(Rp // tr,),
        in_specs=in_specs,
        out_specs=row_spec,
        compiler_params=pltpu.CompilerParams(
            dimension_semantics=("parallel",)),
        cost_estimate=pl.CostEstimate(
            flops=2 * Rp * D, transcendentals=0,
            bytes_accessed=(n_streams + 1) * Rp * D * itemsize),
    )(*args)
    return out[:R] if Rp != R else out


def fused_ln_linear_residual_pallas(x2, gamma, beta, W, b, *, mask2=None,
                                    eps=1e-5, max_tr=512):
    """One pallas_call: LayerNorm -> y @ W + b (MXU) -> dropout -> + x."""
    R, D = x2.shape
    assert W.shape == (D, D), "fused path requires a square d_model projection"
    itemsize = jnp.dtype(x2.dtype).itemsize
    # TODO(synk): for very large d_model, tile W over a K grid axis with a VMEM
    # accumulator instead of holding the whole (D, D) weight per step.
    extra = 2 * (D * D + 3 * D) * 4
    n_streams = 2 if mask2 is None else 3
    tr = _choose_row_tile(R, D, itemsize, max_tr=max_tr, n_streams=n_streams,
                          extra_bytes=extra)
    Rp = _round_up(R, tr)

    gb = jnp.stack([gamma, beta]).astype(jnp.float32)          # (2, D)
    b2 = jnp.asarray(b).reshape(1, D).astype(jnp.float32)
    Wc = jnp.asarray(W).astype(x2.dtype)

    row_spec = pl.BlockSpec((tr, D), lambda i: (i, 0))
    gb_spec = pl.BlockSpec((2, D), lambda i: (0, 0))
    w_spec = pl.BlockSpec((D, D), lambda i: (0, 0))
    b_spec = pl.BlockSpec((1, D), lambda i: (0, 0))

    if mask2 is None:
        kernel = functools.partial(_fused_ln_linear_residual_kernel, eps=eps)
        in_specs = [row_spec, gb_spec, w_spec, b_spec]
        args = (_pad_rows(x2, Rp), gb, Wc, b2)
    else:
        kernel = functools.partial(_fused_ln_linear_residual_dropout_kernel,
                                   eps=eps)
        in_specs = [row_spec, gb_spec, w_spec, b_spec, row_spec]
        args = (_pad_rows(x2, Rp), gb, Wc, b2,
                _pad_rows(mask2.astype(jnp.float32), Rp))

    out = pl.pallas_call(
        kernel,
        out_shape=jax.ShapeDtypeStruct((Rp, D), x2.dtype),
        grid=(Rp // tr,),
        in_specs=in_specs,
        out_specs=row_spec,
        compiler_params=pltpu.CompilerParams(
            dimension_semantics=("parallel",)),
        cost_estimate=pl.CostEstimate(
            flops=2 * Rp * D * D + 12 * Rp * D, transcendentals=Rp,
            bytes_accessed=(n_streams + 1) * Rp * D * itemsize
                           + D * D * itemsize),
    )(*args)
    return out[:R] if Rp != R else out


# --------------------------- module-level forward ------------------------------

def _make_dropout_mask(rng_key, shape, p):
    keep = jax.random.bernoulli(rng_key, 1.0 - p, shape)
    return keep.astype(jnp.float32) * (1.0 / (1.0 - p))


def residual_connection_forward(x, sublayer, gamma, beta, *, p=0.01,
                                training=False, rng_key=None, eps=1e-5,
                                max_tr=1024):
    """General path: Pallas LayerNorm -> arbitrary JAX sublayer -> Pallas
    residual add (+ dropout).  x: [..., d_model]."""
    D = x.shape[-1]
    lead = x.shape[:-1]
    x2 = x.reshape(-1, D)
    y2 = layernorm_pallas(x2, gamma, beta, eps=eps, max_tr=max_tr)
    z = sublayer(y2.reshape(*lead, D))
    z2 = z.reshape(-1, D)

    mask2 = None
    if training and p > 0.0:
        if rng_key is None:
            raise ValueError("training=True dropout requires rng_key")
        mask2 = _make_dropout_mask(rng_key, x.shape, p).reshape(-1, D)

    out2 = residual_add_pallas(x2, z2, mask2=mask2, max_tr=max_tr)
    return out2.reshape(x.shape)


def residual_connection_forward_fused_linear(x, W, b, gamma, beta, *, p=0.01,
                                             training=False, rng_key=None,
                                             eps=1e-5, max_tr=512):
    """Fused path when sublayer(y) = y @ W + b: a single pallas_call."""
    D = x.shape[-1]
    x2 = x.reshape(-1, D)
    mask2 = None
    if training and p > 0.0:
        if rng_key is None:
            raise ValueError("training=True dropout requires rng_key")
        mask2 = _make_dropout_mask(rng_key, x.shape, p).reshape(-1, D)
    out2 = fused_ln_linear_residual_pallas(x2, gamma, beta, W, b, mask2=mask2,
                                           eps=eps, max_tr=max_tr)
    return out2.reshape(x.shape)


# ------------------------------ demo / check ----------------------------------

if __name__ == "__main__":
    B, S, D = 2, 8, 128
    p = 0.01
    eps = 1e-5
    key = jax.random.PRNGKey(0)
    kx, kw, kb, kdrop = jax.random.split(key, 4)

    x = jax.random.normal(kx, (B, S, D), dtype=jnp.float32)
    gamma = jnp.ones((D,), dtype=jnp.float32)   # PyTorch LayerNorm defaults
    beta = jnp.zeros((D,), dtype=jnp.float32)

    W = jax.random.normal(kw, (D, D), dtype=jnp.float32) / jnp.sqrt(D)
    bvec = jax.random.normal(kb, (D,), dtype=jnp.float32) * 0.01
    sublayer = lambda y: jnp.dot(y, W, precision=jax.lax.Precision.HIGHEST) + bvec

    def reference(xv, mask=None):
        mean = jnp.mean(xv, axis=-1, keepdims=True)
        var = jnp.mean((xv - mean) ** 2, axis=-1, keepdims=True)
        ln = (xv - mean) / jnp.sqrt(var + eps) * gamma + beta
        z = sublayer(ln)
        if mask is not None:
            z = z * mask
        return xv + z

    # 1) eval mode, general two-kernel path (dropout is identity).
    out_eval = jax.block_until_ready(
        residual_connection_forward(x, sublayer, gamma, beta, p=p,
                                    training=False, eps=eps))
    assert jnp.allclose(out_eval, reference(x), atol=1e-4, rtol=1e-4), \
        "eval (general path) mismatch vs reference"

    # 2) eval mode, fused LayerNorm + linear + residual kernel.
    out_fused = jax.block_until_ready(
        residual_connection_forward_fused_linear(x, W, bvec, gamma, beta, p=p,
                                                 training=False, eps=eps))
    assert jnp.allclose(out_fused, reference(x), atol=2e-2, rtol=2e-2), \
        "eval (fused path) mismatch vs reference"

    # 3) training mode (dropout active). The mask comes from jax.random, so the
    #    reference can reproduce it exactly.
    mask = _make_dropout_mask(kdrop, x.shape, p)
    out_train = jax.block_until_ready(
        residual_connection_forward(x, sublayer, gamma, beta, p=p,
                                    training=True, rng_key=kdrop, eps=eps))
    assert jnp.allclose(out_train, reference(x, mask), atol=1e-4, rtol=1e-4), \
        "training (general path) mismatch vs reference"

    out_train_fused = jax.block_until_ready(
        residual_connection_forward_fused_linear(x, W, bvec, gamma, beta, p=p,
                                                 training=True, rng_key=kdrop,
                                                 eps=eps))
    assert jnp.allclose(out_train_fused, reference(x, mask),
                        atol=2e-2, rtol=2e-2), \
        "training (fused path) mismatch vs reference"

    print("KERNEL_OK")
</pallas_src>

<mosaic_0001>
module attributes {stable_mosaic.version = 11 : i64} {
  func.func @_layernorm_kernel(%arg0: i32, %arg1: memref<16x128xf32, #tpu.memory_space<vmem>>, %arg2: memref<2x128xf32, #tpu.memory_space<vmem>>, %arg3: memref<16x128xf32, #tpu.memory_space<vmem>>) attributes {dimension_semantics = [#tpu.dimension_semantics<parallel>], iteration_bounds = array<i64: 1>, scalar_prefetch = 0 : i64, scratch_operands = 0 : i64, tpu.core_type = #tpu.core_type<tc>, window_params = [{transform_indices = @transform_0, window_bounds = array<i64: 16, 128>}, {pipeline_mode = #tpu.pipeline_mode<synchronous>, transform_indices = @transform_1, window_bounds = array<i64: 2, 128>}, {transform_indices = @transform_2, window_bounds = array<i64: 16, 128>}]} {
    %c0 = arith.constant 0 : index
    %c0_0 = arith.constant 0 : index
    %0 = vector.load %arg1[%c0, %c0_0] : memref<16x128xf32, #tpu.memory_space<vmem>>, vector<16x128xf32>
    %c0_1 = arith.constant 0 : index
    %c0_2 = arith.constant 0 : index
    %1 = vector.load %arg2[%c0_1, %c0_2] : memref<2x128xf32, #tpu.memory_space<vmem>>, vector<1x128xf32>
    %c1 = arith.constant 1 : index
    %c0_3 = arith.constant 0 : index
    %2 = vector.load %arg2[%c1, %c0_3] : memref<2x128xf32, #tpu.memory_space<vmem>>, vector<1x128xf32>
    %cst = arith.constant dense<0.000000e+00> : vector<16xf32>
    %3 = vector.multi_reduction <add>, %0, %cst [1] : vector<16x128xf32> to vector<16xf32>
    %4 = vector.shape_cast %3 : vector<16xf32> to vector<16x1xf32>
    %cst_4 = arith.constant 1.280000e+02 : f32
    %5 = vector.broadcast %cst_4 : f32 to vector<16x1xf32>
    %6 = arith.divf %4, %5 : vector<16x1xf32>
    %7 = vector.broadcast %6 : vector<16x1xf32> to vector<16x128xf32>
    %8 = arith.subf %0, %7 : vector<16x128xf32>
    %9 = arith.mulf %8, %8 : vector<16x128xf32>
    %cst_5 = arith.constant dense<0.000000e+00> : vector<16xf32>
    %10 = vector.multi_reduction <add>, %9, %cst_5 [1] : vector<16x128xf32> to vector<16xf32>
    %11 = vector.shape_cast %10 : vector<16xf32> to vector<16x1xf32>
    %cst_6 = arith.constant 1.280000e+02 : f32
    %12 = vector.broadcast %cst_6 : f32 to vector<16x1xf32>
    %13 = arith.divf %11, %12 : vector<16x1xf32>
    %cst_7 = arith.constant 9.99999974E-6 : f32
    %14 = vector.broadcast %cst_7 : f32 to vector<16x1xf32>
    %15 = arith.addf %13, %14 : vector<16x1xf32>
    %16 = math.rsqrt %15 : vector<16x1xf32>
    %17 = vector.broadcast %16 : vector<16x1xf32> to vector<16x128xf32>
    %18 = arith.mulf %8, %17 : vector<16x128xf32>
    %19 = vector.broadcast %1 : vector<1x128xf32> to vector<16x128xf32>
    %20 = arith.mulf %18, %19 : vector<16x128xf32>
    %21 = vector.broadcast %2 : vector<1x128xf32> to vector<16x128xf32>
    %22 = arith.addf %20, %21 : vector<16x128xf32>
    %c0_8 = arith.constant 0 : index
    %c0_9 = arith.constant 0 : index
    %23 = vector.load %arg3[%c0_8, %c0_9] : memref<16x128xf32, #tpu.memory_space<vmem>>, vector<16x128xf32>
    tpu.vector_store %arg3[%c0_8, %c0_9], %22 {strides = array<i32>} : memref<16x128xf32, #tpu.memory_space<vmem>>, vector<16x128xf32>,
    return
  }
  func.func @transform_0(%arg0: i32) -> (i32, i32) {
    %c0_i32 = arith.constant 0 : i32
    %c0_i32_0 = arith.constant 0 : i32
    return %arg0, %c0_i32 : i32, i32
  }
  func.func @transform_1(%arg0: i32) -> (i32, i32) {
    %c0_i32 = arith.constant 0 : i32
    %c0_i32_0 = arith.constant 0 : i32
    %c0_i32_1 = arith.constant 0 : i32
    return %c0_i32, %c0_i32_0 : i32, i32
  }
  func.func @transform_2(%arg0: i32) -> (i32, i32) {
    %c0_i32 = arith.constant 0 : i32
    %c0_i32_0 = arith.constant 0 : i32
    return %arg0, %c0_i32 : i32, i32
  }
}

</mosaic_0001>

<llo_original>
// kernel: tpu_custom_call.1
$region0: #{tpu_custom_call.1}
  #allocation0 [shape = 'u32[]', space=smem, size = 0x4, offset = 0x4, fixed_abs, tag = 'smem constant byte address 0x4 - core index']
  #allocation1 [shape = 'u32[144,128]{1,0:T(1,128)}', space=vmem, size = 0x12000, scoped, tag = 'internal scratch']
  %s0 = inlined_call_operand.hbm [shape: f32[16,128], index: 0, kind: input, shape index: {}]
  %s1 = inlined_call_operand.vmem [shape: f32[2,128], index: 1, kind: input, shape index: {}]
  %s2 = inlined_call_operand.hbm [shape: f32[16,128], index: 2, kind: output, shape index: {}]
  %s3 = sld [smem:[#allocation0]]
  $region22: #{tpu_custom_call.1} parent=0
    _
  %s5 = ssub.s32 1, %s3
  %s6 = scalar_select 0, %s5, %s3
  $region1: #{tpu_custom_call.1} parent=0
    #allocation2 [shape = 'u8[8192]{0}', space=vmem, size = 0x2000, scoped, tag = 'input window, operand 0, single buffered']
    #allocation3 [shape = 's32[1]{0}', space=sflag, size = 0x4, scoped, tag = 'scoped memory for tpu_custom_call.1']
    #allocation4 [shape = 's32[1]{0}', space=sflag, size = 0x4, scoped, tag = 'scoped memory for tpu_custom_call.1']
    #allocation5 [shape = 'u8[8192]{0}', space=vmem, size = 0x2000, scoped, tag = 'output window, operand 0, single buffered']
    %7 = vsyncpa [#allocation3], 0
    %8 = vsyncpa [#allocation4], 0
    // Predicated region
    $region2: #{tpu_custom_call.1} parent=1 // pred_check
      _
    $region3: #{tpu_custom_call.1} parent=1 // pred_check_branch
      %10 = sbr.rel (0) target = $region5
    $region4: #{tpu_custom_call.1} parent=1 // pred_region
      %s12 = ssub.s32 256, 256
      %13 = vsyncadd [#allocation3], %s12
      %s14 = sshll.u32 [#allocation2], 4
      %s15 = int_to_ptr.vmem [resolvable:$true] %s14
      %20 = dma.hbm_to_vmem [thread:$0]  %s0, 256, %s15, [#allocation3], 128, 128, 8
    $region5: #{tpu_custom_call.1} parent=1 // pred_fallthru
      _
    // Predicated region
    $region6: #{tpu_custom_call.1} parent=1 // pred_check
      _
    $region7: #{tpu_custom_call.1} parent=1 // pred_check_branch
      %22 = sbr.rel (0) target = $region9
    $region8: #{tpu_custom_call.1} parent=1 // pred_region
      _
    $region9: #{tpu_custom_call.1} parent=1 // pred_fallthru
      _
    // Predicated region
    $region10: #{tpu_custom_call.1} parent=1 // pred_check
      _
    $region11: #{tpu_custom_call.1} parent=1 // pred_check_branch
      %24 = sbr.rel (0) target = $region13
    $region12: #{tpu_custom_call.1} parent=1 // pred_region
      %25 = dma.done [#allocation3], 256
    $region13: #{tpu_custom_call.1} parent=1 // pred_fallthru
      _
    %v26 = vld [vmem:[#allocation2] sm:$0xff]
    %v27 = vld [vmem:[#allocation2 + $0x8] sm:$0xff]
    %v28 = vld [vmem:[%s1] sm:$0x1]
    %v29 = vld [vmem:[%s1 + $0x1] sm:$0x1]
    %30 = vadd.xlane.f32.xlu0 %v26
    %v31 = vpop.xlane.xlu0 %30
    %32 = vadd.xlane.f32.xlu0 %v27
    %v33 = vpop.xlane.xlu0 %32
    %v34 = vrcp.pop 128.0
    %v35 = vmul.f32 %v31, %v34
    %v36 = vmul.f32 %v33, %v34
    %v37 = vsub.f32 %v26, %v35
    %v38 = vsub.f32 %v27, %v36
    %v39 = vmul.f32 %v37, %v37
    %v40 = vmul.f32 %v38, %v38
    %41 = vadd.xlane.f32.xlu0 %v39
    %v42 = vpop.xlane.xlu0 %41
    %43 = vadd.xlane.f32.xlu0 %v40
    %v44 = vpop.xlane.xlu0 %43
    %v45 = vmul.f32 %v42, %v34
    %v46 = vmul.f32 %v44, %v34
    %v47 = vadd.f32 %v45, 1e-05
    %v48 = vadd.f32 %v46, 1e-05
    %v49 = vrsqrt.pop %v47
    %v50 = vrsqrt.pop %v48
    %v51 = vmul.f32 %v37, %v49
    %v52 = vmul.f32 %v38, %v50
    %v53 = vlaneseq
    %v54 = vshrl.u32 %v53, 7
    %v55 = vsub.s32 0, %v54
    %v56 = vrot.slane %v28, %v55
    %v57 = vmul.f32 %v51, %v56
    %v58 = vmul.f32 %v52, %v56
    %v59 = vlaneseq
    %v60 = vshrl.u32 %v59, 7
    %v61 = vsub.s32 0, %v60
    %v62 = vrot.slane %v29, %v61
    %v63 = vadd.f32 %v57, %v62
    %v64 = vadd.f32 %v58, %v62
    %65 = vst [vmem:[#allocation5] sm:$0xff] %v63
    %66 = vst [vmem:[#allocation5 + $0x8] sm:$0xff] %v64
    // Predicated region
    $region14: #{tpu_custom_call.1} parent=1 // pred_check
      _
    $region15: #{tpu_custom_call.1} parent=1 // pred_check_branch
      %68 = sbr.rel (0) target = $region17
    $region16: #{tpu_custom_call.1} parent=1 // pred_region
      %s70 = ssub.s32 256, 256
      %71 = vsyncadd [#allocation4], %s70
      %s72 = sshll.u32 [#allocation5], 4
      %s73 = int_to_ptr.vmem [resolvable:$true] %s72
      %78 = dma.vmem_to_hbm [thread:$0]  %s73, 256, %s2, [#allocation4], 128, 128, 8
    $region17: #{tpu_custom_call.1} parent=1 // pred_fallthru
      _
    // Predicated region
    $region18: #{tpu_custom_call.1} parent=1 // pred_check
      _
    $region19: #{tpu_custom_call.1} parent=1 // pred_check_branch
      %80 = sbr.rel (0) target = $region21
    $region20: #{tpu_custom_call.1} parent=1 // pred_region
      %81 = dma.done [#allocation4], 256
    $region21: #{tpu_custom_call.1} parent=1 // pred_fallthru
      _
    %82 = vsyncpa [#allocation3], 1
    %83 = vsyncpa [#allocation4], 1

</llo_original>
